<compile_context>
chip_gen: v7x
topology: tpu7x:2x2x1
jax: 0.10.0
libtpu: 0.0.40
codegen_flags: <defaults>
</compile_context>

<pallas_src>
import jax
import jax.numpy as jnp
from jax.experimental import pallas as pl
from jax.experimental.pallas import tpu as pltpu


def _round_up(a, b):
    return -(-a // b) * b


def _mlp_kernel(s_ref,               # SMEM: (3,) = [alpha1, alpha2, b3]
                x_ref,               # VMEM: (2, TB) f32   x transposed, batch on lanes
                w1t_ref, b1t_ref,    # VMEM: (D, 2) f32, (D, 1) f32
                w2t_ref, b2t_ref,    # VMEM: (D, D) bf16, (D, 1) f32
                w3c_ref,             # VMEM: (D, 1) f32   layer-3 weights as a column
                o_ref):              # VMEM: (1, TB) f32  lane-dense output
    a1 = s_ref[0]
    a2 = s_ref[1]
    b3 = s_ref[2]

    xT = x_ref[...]                                  # (2, TB)

    # ---- Layer 1: Linear(2, D) as two VPU broadcast-FMAs (K=2 would waste the MXU) ----
    w1 = w1t_ref[...]                                # (D, 2)
    h = (w1[:, 0:1] * xT[0:1, :]
         + w1[:, 1:2] * xT[1:2, :]
         + b1t_ref[...])                             # (D, TB) f32
    h = jnp.where(h > 0, h, a1 * h)                  # PReLU

    # ---- Layer 2: Linear(D, D) on the MXU, single-pass bf16 with f32 accumulation ----
    h = jnp.dot(w2t_ref[...], h.astype(jnp.bfloat16),
                preferred_element_type=jnp.float32) + b2t_ref[...]   # (D, TB) f32
    h = jnp.where(h > 0, h, a2 * h)                  # PReLU

    # ---- Layer 3: Linear(D, 1) off the MXU: VPU multiply + sublane reduction ----
    z = jnp.sum(w3c_ref[...] * h, axis=0, keepdims=True) + b3        # (1, TB)

    # ---- Softplus (PyTorch default: identity above threshold=20) ----
    sp = jnp.log1p(jnp.exp(jnp.minimum(z, 20.0)))
    o_ref[...] = jnp.where(z > 20.0, z, sp)


def energy_model2_forward(x, params, *, tile_b=8192):
    """x: [N, 2] float32 -> [N] float32 (EnergyModel2 forward)."""
    N, F = x.shape
    assert F == 2
    D = params["w1"].shape[1]

    # ---- lane-dense tile sizing -------------------------------------------------
    tile_b = max(128, _round_up(int(tile_b), 128))
    tile_b = min(tile_b, 16384)                      # keeps intermediates well under 32 MiB VMEM
    n128 = _round_up(N, 128)                         # pad batch only to a lane multiple
    if n128 >= 2 * 128:                              # v7x: keep >= 2 grid steps (2 TensorCores)
        tile_b = min(tile_b, _round_up(-(-n128 // 2), 128))
    tile_b = min(tile_b, n128)
    grid = pl.cdiv(n128, tile_b)                     # ragged last tile handled by Pallas

    # ---- one-time layout plumbing (batch-on-lanes) --------------------------------
    xT = jnp.transpose(x.astype(jnp.float32))                        # (2, N)
    if n128 != N:
        xT = jnp.pad(xT, ((0, 0), (0, n128 - N)))                    # (2, n128)

    w1t = jnp.transpose(params["w1"]).astype(jnp.float32)            # (D, 2)
    b1t = jnp.reshape(params["b1"], (D, 1)).astype(jnp.float32)      # (D, 1)
    w2t = jnp.transpose(params["w2"]).astype(jnp.bfloat16)           # (D, D) bf16 (1-pass MXU)
    b2t = jnp.reshape(params["b2"], (D, 1)).astype(jnp.float32)      # (D, 1)
    w3c = jnp.reshape(params["w3"], (D, 1)).astype(jnp.float32)      # (D, 1) column (VPU layer 3)
    scalars = jnp.stack([params["a1"], params["a2"],
                         params["b3"][0, 0]]).astype(jnp.float32)    # (3,) -> SMEM

    out = pl.pallas_call(
        _mlp_kernel,
        out_shape=jax.ShapeDtypeStruct((1, n128), jnp.float32),
        grid=(grid,),
        in_specs=[
            pl.BlockSpec(memory_space=pltpu.SMEM),             # [a1, a2, b3] scalars
            pl.BlockSpec((2, tile_b), lambda i: (0, i)),       # xT tile (batch on lanes)
            pl.BlockSpec((D, 2),      lambda i: (0, 0)),       # W1T
            pl.BlockSpec((D, 1),      lambda i: (0, 0)),       # b1 column
            pl.BlockSpec((D, D),      lambda i: (0, 0)),       # W2T (bf16)
            pl.BlockSpec((D, 1),      lambda i: (0, 0)),       # b2 column
            pl.BlockSpec((D, 1),      lambda i: (0, 0)),       # w3 column
        ],
        out_specs=pl.BlockSpec((1, tile_b), lambda i: (0, i)), # lane-dense output
        compiler_params=pltpu.CompilerParams(
            dimension_semantics=("parallel",),
            vmem_limit_bytes=32 * 1024 * 1024),
    )(scalars, xT, w1t, b1t, w2t, b2t, w3c)

    return out[0, :N]                                          # drop padding + squeeze(-1)


def init_params(key, dim):
    """Deterministic init mirroring nn.Linear default U(-1/sqrt(fan_in), +) and PReLU a=0.25.

    Stored in 'x @ W' layout (w1:[2,D], w2:[D,D], w3:[D,1], b:[1,D]); the wrapper
    transposes/casts once to the kernel's batch-on-lanes layout.
    """
    ks = jax.random.split(key, 6)

    def linear(kw, kb, fan_in, fan_out):
        bound = 1.0 / jnp.sqrt(fan_in)
        w = jax.random.uniform(kw, (fan_in, fan_out), jnp.float32, -bound, bound)
        b = jax.random.uniform(kb, (1, fan_out), jnp.float32, -bound, bound)
        return w, b

    w1, b1 = linear(ks[0], ks[1], 2, dim)
    w2, b2 = linear(ks[2], ks[3], dim, dim)
    w3, b3 = linear(ks[4], ks[5], dim, 1)
    return {
        "w1": w1, "b1": b1, "a1": jnp.float32(0.25),
        "w2": w2, "b2": b2, "a2": jnp.float32(0.25),
        "w3": w3, "b3": b3,
    }


def _reference(x, p, *, bf16_layer2=False):
    """Pure-JAX reference. bf16_layer2=True mirrors the kernel's bf16 MXU pass."""
    def prelu(h, a):
        return jnp.where(h > 0, h, a * h)
    h = prelu(x @ p["w1"] + p["b1"], p["a1"])
    if bf16_layer2:
        z2 = jnp.dot(h.astype(jnp.bfloat16), p["w2"].astype(jnp.bfloat16),
                     preferred_element_type=jnp.float32)
    else:
        z2 = h @ p["w2"]
    h = prelu(z2 + p["b2"], p["a2"])
    z = h @ p["w3"] + p["b3"]
    z = jnp.where(z > 20.0, z, jnp.log1p(jnp.exp(jnp.minimum(z, 20.0))))
    return z[:, 0]


if __name__ == "__main__":
    key = jax.random.PRNGKey(0)
    k_param, k_x = jax.random.split(key)

    dim = 32        # hidden width of EnergyModel2
    N = 200         # non-multiple of 128 to exercise the padding path (grid = 2 tiles)
    params = init_params(k_param, dim)
    x = jax.random.normal(k_x, (N, 2), jnp.float32)

    y = energy_model2_forward(x, params)
    y = jax.block_until_ready(y)

    assert y.shape == (N,)
    assert bool(jnp.all(jnp.isfinite(y)))

    # Tight check vs. a reference that mirrors the bf16 layer-2 matmul (f32 accumulate).
    y_ref_bf16 = _reference(x, params, bf16_layer2=True)
    assert jnp.allclose(y, y_ref_bf16, atol=2e-3, rtol=2e-3)

    # Loose semantic check vs. the pure-f32 reference (bf16 cast costs ~1e-3 abs here).
    y_ref_f32 = _reference(x, params, bf16_layer2=False)
    assert jnp.allclose(y, y_ref_f32, atol=1e-1, rtol=1e-1)

    print("KERNEL_OK")
</pallas_src>

<mosaic_0001>
module attributes {stable_mosaic.version = 11 : i64} {
  func.func @_mlp_kernel(%arg0: i32, %arg1: memref<3xf32, #tpu.memory_space<smem>>, %arg2: memref<2x128xf32, #tpu.memory_space<vmem>>, %arg3: memref<32x2xf32, #tpu.memory_space<vmem>>, %arg4: memref<32x1xf32, #tpu.memory_space<vmem>>, %arg5: memref<32x32xbf16, #tpu.memory_space<vmem>>, %arg6: memref<32x1xf32, #tpu.memory_space<vmem>>, %arg7: memref<32x1xf32, #tpu.memory_space<vmem>>, %arg8: memref<1x128xf32, #tpu.memory_space<vmem>>) attributes {dimension_semantics = [#tpu.dimension_semantics<parallel>], iteration_bounds = array<i64: 2>, scalar_prefetch = 0 : i64, scratch_operands = 0 : i64, tpu.core_type = #tpu.core_type<tc>, window_params = [{transform_indices = @transform_0, window_bounds = array<i64: 3>}, {transform_indices = @transform_1, window_bounds = array<i64: 2, 128>}, {pipeline_mode = #tpu.pipeline_mode<synchronous>, transform_indices = @transform_2, window_bounds = array<i64: 32, 2>}, {pipeline_mode = #tpu.pipeline_mode<synchronous>, transform_indices = @transform_3, window_bounds = array<i64: 32, 1>}, {pipeline_mode = #tpu.pipeline_mode<synchronous>, transform_indices = @transform_4, window_bounds = array<i64: 32, 32>}, {pipeline_mode = #tpu.pipeline_mode<synchronous>, transform_indices = @transform_5, window_bounds = array<i64: 32, 1>}, {pipeline_mode = #tpu.pipeline_mode<synchronous>, transform_indices = @transform_6, window_bounds = array<i64: 32, 1>}, {transform_indices = @transform_7, window_bounds = array<i64: 1, 128>}]} {
    %c0 = arith.constant 0 : index
    %0 = memref.load %arg1[%c0] : memref<3xf32, #tpu.memory_space<smem>>
    %c1 = arith.constant 1 : index
    %1 = memref.load %arg1[%c1] : memref<3xf32, #tpu.memory_space<smem>>
    %c2 = arith.constant 2 : index
    %2 = memref.load %arg1[%c2] : memref<3xf32, #tpu.memory_space<smem>>
    %c0_0 = arith.constant 0 : index
    %c0_1 = arith.constant 0 : index
    %3 = vector.load %arg2[%c0_0, %c0_1] : memref<2x128xf32, #tpu.memory_space<vmem>>, vector<2x128xf32>
    %c0_2 = arith.constant 0 : index
    %c0_3 = arith.constant 0 : index
    %4 = vector.load %arg3[%c0_2, %c0_3] : memref<32x2xf32, #tpu.memory_space<vmem>>, vector<32x2xf32>
    %5 = vector.extract_strided_slice %4 {offsets = [0, 0], sizes = [32, 1], strides = [1, 1]} : vector<32x2xf32> to vector<32x1xf32>
    %6 = vector.extract_strided_slice %3 {offsets = [0, 0], sizes = [1, 128], strides = [1, 1]} : vector<2x128xf32> to vector<1x128xf32>
    %7 = vector.broadcast %5 : vector<32x1xf32> to vector<32x128xf32>
    %8 = vector.broadcast %6 : vector<1x128xf32> to vector<32x128xf32>
    %9 = arith.mulf %7, %8 : vector<32x128xf32>
    %10 = vector.extract_strided_slice %4 {offsets = [0, 1], sizes = [32, 1], strides = [1, 1]} : vector<32x2xf32> to vector<32x1xf32>
    %11 = vector.extract_strided_slice %3 {offsets = [1, 0], sizes = [1, 128], strides = [1, 1]} : vector<2x128xf32> to vector<1x128xf32>
    %12 = vector.broadcast %10 : vector<32x1xf32> to vector<32x128xf32>
    %13 = vector.broadcast %11 : vector<1x128xf32> to vector<32x128xf32>
    %14 = arith.mulf %12, %13 : vector<32x128xf32>
    %15 = arith.addf %9, %14 : vector<32x128xf32>
    %c0_4 = arith.constant 0 : index
    %c0_5 = arith.constant 0 : index
    %16 = vector.load %arg4[%c0_4, %c0_5] : memref<32x1xf32, #tpu.memory_space<vmem>>, vector<32x1xf32>
    %17 = vector.broadcast %16 : vector<32x1xf32> to vector<32x128xf32>
    %18 = arith.addf %15, %17 : vector<32x128xf32>
    %cst = arith.constant 0.000000e+00 : f32
    %19 = vector.broadcast %cst : f32 to vector<32x128xf32>
    %20 = arith.cmpf ogt, %18, %19 : vector<32x128xf32>
    %21 = vector.broadcast %0 : f32 to vector<32x128xf32>
    %22 = arith.mulf %21, %18 : vector<32x128xf32>
    %23 = arith.select %20, %18, %22 : vector<32x128xi1>, vector<32x128xf32>
    %c0_6 = arith.constant 0 : index
    %c0_7 = arith.constant 0 : index
    %24 = vector.load %arg5[%c0_6, %c0_7] : memref<32x32xbf16, #tpu.memory_space<vmem>>, vector<32x32xbf16>
    %25 = arith.truncf %23 : vector<32x128xf32> to vector<32x128xbf16>
    %cst_8 = arith.constant dense<0.000000e+00> : vector<32x128xf32>
    %26 = tpu.matmul %24, %25, %cst_8 {dimension_numbers = #tpu.dot_dimension_numbers<[1], [0], [0], [1], [0, 0, 1, 1], [], []>} : vector<32x32xbf16>, vector<32x128xbf16>, vector<32x128xf32> -> vector<32x128xf32>
    %c0_9 = arith.constant 0 : index
    %c0_10 = arith.constant 0 : index
    %27 = vector.load %arg6[%c0_9, %c0_10] : memref<32x1xf32, #tpu.memory_space<vmem>>, vector<32x1xf32>
    %28 = vector.broadcast %27 : vector<32x1xf32> to vector<32x128xf32>
    %29 = arith.addf %26, %28 : vector<32x128xf32>
    %cst_11 = arith.constant 0.000000e+00 : f32
    %30 = vector.broadcast %cst_11 : f32 to vector<32x128xf32>
    %31 = arith.cmpf ogt, %29, %30 : vector<32x128xf32>
    %32 = vector.broadcast %1 : f32 to vector<32x128xf32>
    %33 = arith.mulf %32, %29 : vector<32x128xf32>
    %34 = arith.select %31, %29, %33 : vector<32x128xi1>, vector<32x128xf32>
    %c0_12 = arith.constant 0 : index
    %c0_13 = arith.constant 0 : index
    %35 = vector.load %arg7[%c0_12, %c0_13] : memref<32x1xf32, #tpu.memory_space<vmem>>, vector<32x1xf32>
    %36 = vector.broadcast %35 : vector<32x1xf32> to vector<32x128xf32>
    %37 = arith.mulf %36, %34 : vector<32x128xf32>
    %cst_14 = arith.constant dense<0.000000e+00> : vector<128xf32>
    %38 = vector.multi_reduction <add>, %37, %cst_14 [0] : vector<32x128xf32> to vector<128xf32>
    %39 = vector.shape_cast %38 : vector<128xf32> to vector<1x128xf32>
    %40 = vector.broadcast %2 : f32 to vector<1x128xf32>
    %41 = arith.addf %39, %40 : vector<1x128xf32>
    %cst_15 = arith.constant 2.000000e+01 : f32
    %42 = vector.broadcast %cst_15 : f32 to vector<1x128xf32>
    %43 = arith.minimumf %41, %42 : vector<1x128xf32>
    %44 = math.exp %43 : vector<1x128xf32>
    %45 = math.log1p %44 : vector<1x128xf32>
    %cst_16 = arith.constant 2.000000e+01 : f32
    %46 = vector.broadcast %cst_16 : f32 to vector<1x128xf32>
    %47 = arith.cmpf ogt, %41, %46 : vector<1x128xf32>
    %48 = arith.select %47, %41, %45 : vector<1x128xi1>, vector<1x128xf32>
    %c0_17 = arith.constant 0 : index
    %c0_18 = arith.constant 0 : index
    %49 = vector.load %arg8[%c0_17, %c0_18] : memref<1x128xf32, #tpu.memory_space<vmem>>, vector<1x128xf32>
    tpu.vector_store %arg8[%c0_17, %c0_18], %48 {strides = array<i32>} : memref<1x128xf32, #tpu.memory_space<vmem>>, vector<1x128xf32>,
    return
  }
  func.func @transform_0(%arg0: i32) -> i32 {
    %c0_i32 = arith.constant 0 : i32
    %c0_i32_0 = arith.constant 0 : i32
    return %c0_i32 : i32
  }
  func.func @transform_1(%arg0: i32) -> (i32, i32) {
    %c0_i32 = arith.constant 0 : i32
    %c0_i32_0 = arith.constant 0 : i32
    return %c0_i32, %arg0 : i32, i32
  }
  func.func @transform_2(%arg0: i32) -> (i32, i32) {
    %c0_i32 = arith.constant 0 : i32
    %c0_i32_0 = arith.constant 0 : i32
    %c0_i32_1 = arith.constant 0 : i32
    return %c0_i32, %c0_i32_0 : i32, i32
  }
  func.func @transform_3(%arg0: i32) -> (i32, i32) {
    %c0_i32 = arith.constant 0 : i32
    %c0_i32_0 = arith.constant 0 : i32
    %c0_i32_1 = arith.constant 0 : i32
    return %c0_i32, %c0_i32_0 : i32, i32
  }
  func.func @transform_4(%arg0: i32) -> (i32, i32) {
    %c0_i32 = arith.constant 0 : i32
    %c0_i32_0 = arith.constant 0 : i32
    %c0_i32_1 = arith.constant 0 : i32
    return %c0_i32, %c0_i32_0 : i32, i32
  }
  func.func @transform_5(%arg0: i32) -> (i32, i32) {
    %c0_i32 = arith.constant 0 : i32
    %c0_i32_0 = arith.constant 0 : i32
    %c0_i32_1 = arith.constant 0 : i32
    return %c0_i32, %c0_i32_0 : i32, i32
  }
  func.func @transform_6(%arg0: i32) -> (i32, i32) {
    %c0_i32 = arith.constant 0 : i32
    %c0_i32_0 = arith.constant 0 : i32
    %c0_i32_1 = arith.constant 0 : i32
    return %c0_i32, %c0_i32_0 : i32, i32
  }
  func.func @transform_7(%arg0: i32) -> (i32, i32) {
    %c0_i32 = arith.constant 0 : i32
    %c0_i32_0 = arith.constant 0 : i32
    return %c0_i32, %arg0 : i32, i32
  }
}

</mosaic_0001>

<llo_original>
// kernel: tpu_custom_call.1
$region0: #{tpu_custom_call.1}
  #allocation0 [shape = 'u32[]', space=smem, size = 0x4, offset = 0x4, fixed_abs, tag = 'smem constant byte address 0x4 - core index']
  #allocation1 [shape = 'u32[144,128]{1,0:T(1,128)}', space=vmem, size = 0x12000, scoped, tag = 'internal scratch']
  %s0 = inlined_call_operand.vmem [shape: f32[3], index: 0, kind: input, shape index: {}]
  %s1 = inlined_call_operand.vmem [shape: f32[2,256], index: 1, kind: input, shape index: {}]
  %s2 = inlined_call_operand.vmem [shape: f32[32,2], index: 2, kind: input, shape index: {}]
  %s3 = inlined_call_operand.vmem [shape: f32[32,1], index: 3, kind: input, shape index: {}]
  %s4 = inlined_call_operand.vmem [shape: bf16[32,32], index: 4, kind: input, shape index: {}]
  %s5 = inlined_call_operand.vmem [shape: f32[32,1], index: 5, kind: input, shape index: {}]
  %s6 = inlined_call_operand.vmem [shape: f32[32,1], index: 6, kind: input, shape index: {}]
  %s7 = inlined_call_operand.hbm [shape: f32[1,256], index: 7, kind: output, shape index: {}]
  %s8 = sld [smem:[#allocation0]]
  $region65: #{tpu_custom_call.1} parent=0
    _
  %s10 = ssub.s32 1, %s8
  %s11 = scalar_select 0, %s10, %s8
  $region1: #{tpu_custom_call.1} parent=0
    #allocation2 [shape = 'u8[512]{0}', space=smem, size = 0x200, scoped, tag = 'input window, operand 0, single buffered']
    #allocation3 [shape = 's32[2]{0}', space=sflag, size = 0x8, scoped, tag = 'scoped memory for tpu_custom_call.1']
    #allocation4 [shape = 's32[2]{0}', space=sflag, size = 0x8, scoped, tag = 'scoped memory for tpu_custom_call.1']
    #allocation5 [shape = 'u8[1024]{0}', space=vmem, size = 0x400, scoped, tag = 'output window, operand 0']
    %12 = vsyncpa [#allocation4], 0
    %13 = vsyncpa [#allocation3], 0
    %s14 = scalar_lea.sflag [#allocation3], 1
    %15 = vsyncpa %s14, 0
    loop: start=0, step=1, limit=4
    $region2: #{tpu_custom_call.1} parent=1 // loop_pre_header
      _
    $region3: #{tpu_custom_call.1} parent=1 // loop_header
      %s17 = sphi 0, %s21
      %p18 = scmp.ge.s32.totalorder %s17, 4
      %s25 = sphi 0, %s25
      %s27 = sphi 0, %s25
      %s28 = sphi 0, %s27
      %s42 = sphi 0, %s28
      %s48 = sphi 0, %s50
      %s51 = sphi 0, %s48
      %s52 = sphi 0, %s51
      %s68 = sphi 0, %s52
      %s72 = sphi 0, %s72
      %s74 = sphi 0, %s72
      %s75 = sphi 0, %s74
      %s89 = sphi 0, %s75
      %s93 = sphi 0, %s93
      %s95 = sphi 0, %s93
      %s96 = sphi 0, %s95
      %s110 = sphi 0, %s96
      %s114 = sphi 0, %s114
      %s116 = sphi 0, %s114
      %s117 = sphi 0, %s116
      %s131 = sphi 0, %s117
      %s135 = sphi 0, %s135
      %s137 = sphi 0, %s135
      %s138 = sphi 0, %s137
      %s152 = sphi 0, %s138
      %s156 = sphi 0, %s156
      %s158 = sphi 0, %s156
      %s159 = sphi 0, %s158
      %s173 = sphi 0, %s159
      %s179 = sphi 0, %s181
      %s182 = sphi 0, %s179
      %s183 = sphi 0, %s182
      %s199 = sphi 0, %s183
    $region4: #{tpu_custom_call.1} parent=1 // loop_header_branch
      %20 = sbr.rel (%p18) target = $region8
    $region5: #{tpu_custom_call.1} parent=1 // loop_body
      %s22 = ssub.s32 %s17, 1
      %s23 = ssub.s32 %s17, 2
      %s24 = sadd.s32 %s17, 1
      %s26 = sadd.s32 %s25, 1
      %p29 = scmp.eq.s32.totalorder %s17, 1
      %p30 = scmp.ne.s32.totalorder %s25, %s27
      %p31 = scmp.eq.s32.totalorder %s17, 0
      %p32 = por %p30, %p31
      %p33 = scmp.ne.s32.totalorder %s25, %s27
      %p34 = scmp.eq.s32.totalorder %s22, 1
      %p35 = por %p33, %p34
      %p36 = scmp.ne.s32.totalorder %s27, %s28
      %p37 = scmp.eq.s32.totalorder %s22, 0
      %p38 = por %p36, %p37
      %p39 = scmp.ne.s32.totalorder %s27, %s28
      %p40 = scmp.eq.s32.totalorder %s23, 1
      %p41 = por %p39, %p40
      %p43 = scmp.ne.s32.totalorder %s28, %s42
      %p44 = scmp.eq.s32.totalorder %s23, 0
      %p45 = por %p43, %p44
      %s46 = ssub.s32 %s17, %s24
      %p47 = scmp.eq.s32.totalorder %s46, 0
      %s49 = sadd.s32 %s48, 1
      %s50 = scalar_select %p47, %s48, %s49
      %p53 = pneg %p47
      %p54 = scmp.eq.s32.totalorder %s17, 1
      %p55 = por %p53, %p54
      %p56 = scmp.ne.s32.totalorder %s48, %s51
      %p57 = scmp.eq.s32.totalorder %s17, 0
      %p58 = por %p56, %p57
      %p59 = scmp.ne.s32.totalorder %s48, %s51
      %p60 = scmp.eq.s32.totalorder %s22, 1
      %p61 = por %p59, %p60
      %p62 = scmp.ne.s32.totalorder %s51, %s52
      %p63 = scmp.eq.s32.totalorder %s22, 0
      %p64 = por %p62, %p63
      %p65 = scmp.ne.s32.totalorder %s51, %s52
      %p66 = scmp.eq.s32.totalorder %s23, 1
      %p67 = por %p65, %p66
      %p69 = scmp.ne.s32.totalorder %s52, %s68
      %p70 = scmp.eq.s32.totalorder %s23, 0
      %p71 = por %p69, %p70
      %s73 = sadd.s32 %s72, 1
      %p76 = scmp.eq.s32.totalorder %s17, 1
      %p77 = scmp.ne.s32.totalorder %s72, %s74
      %p78 = scmp.eq.s32.totalorder %s17, 0
      %p79 = por %p77, %p78
      %p80 = scmp.ne.s32.totalorder %s72, %s74
      %p81 = scmp.eq.s32.totalorder %s22, 1
      %p82 = por %p80, %p81
      %p83 = scmp.ne.s32.totalorder %s74, %s75
      %p84 = scmp.eq.s32.totalorder %s22, 0
      %p85 = por %p83, %p84
      %p86 = scmp.ne.s32.totalorder %s74, %s75
      %p87 = scmp.eq.s32.totalorder %s23, 1
      %p88 = por %p86, %p87
      %p90 = scmp.ne.s32.totalorder %s75, %s89
      %p91 = scmp.eq.s32.totalorder %s23, 0
      %p92 = por %p90, %p91
      %s94 = sadd.s32 %s93, 1
      %p97 = scmp.eq.s32.totalorder %s17, 1
      %p98 = scmp.ne.s32.totalorder %s93, %s95
      %p99 = scmp.eq.s32.totalorder %s17, 0
      %p100 = por %p98, %p99
      %p101 = scmp.ne.s32.totalorder %s93, %s95
      %p102 = scmp.eq.s32.totalorder %s22, 1
      %p103 = por %p101, %p102
      %p104 = scmp.ne.s32.totalorder %s95, %s96
      %p105 = scmp.eq.s32.totalorder %s22, 0
      %p106 = por %p104, %p105
      %p107 = scmp.ne.s32.totalorder %s95, %s96
      %p108 = scmp.eq.s32.totalorder %s23, 1
      %p109 = por %p107, %p108
      %p111 = scmp.ne.s32.totalorder %s96, %s110
      %p112 = scmp.eq.s32.totalorder %s23, 0
      %p113 = por %p111, %p112
      %s115 = sadd.s32 %s114, 1
      %p118 = scmp.eq.s32.totalorder %s17, 1
      %p119 = scmp.ne.s32.totalorder %s114, %s116
      %p120 = scmp.eq.s32.totalorder %s17, 0
      %p121 = por %p119, %p120
      %p122 = scmp.ne.s32.totalorder %s114, %s116
      %p123 = scmp.eq.s32.totalorder %s22, 1
      %p124 = por %p122, %p123
      %p125 = scmp.ne.s32.totalorder %s116, %s117
      %p126 = scmp.eq.s32.totalorder %s22, 0
      %p127 = por %p125, %p126
      %p128 = scmp.ne.s32.totalorder %s116, %s117
      %p129 = scmp.eq.s32.totalorder %s23, 1
      %p130 = por %p128, %p129
      %p132 = scmp.ne.s32.totalorder %s117, %s131
      %p133 = scmp.eq.s32.totalorder %s23, 0
      %p134 = por %p132, %p133
      %s136 = sadd.s32 %s135, 1
      %p139 = scmp.eq.s32.totalorder %s17, 1
      %p140 = scmp.ne.s32.totalorder %s135, %s137
      %p141 = scmp.eq.s32.totalorder %s17, 0
      %p142 = por %p140, %p141
      %p143 = scmp.ne.s32.totalorder %s135, %s137
      %p144 = scmp.eq.s32.totalorder %s22, 1
      %p145 = por %p143, %p144
      %p146 = scmp.ne.s32.totalorder %s137, %s138
      %p147 = scmp.eq.s32.totalorder %s22, 0
      %p148 = por %p146, %p147
      %p149 = scmp.ne.s32.totalorder %s137, %s138
      %p150 = scmp.eq.s32.totalorder %s23, 1
      %p151 = por %p149, %p150
      %p153 = scmp.ne.s32.totalorder %s138, %s152
      %p154 = scmp.eq.s32.totalorder %s23, 0
      %p155 = por %p153, %p154
      %s157 = sadd.s32 %s156, 1
      %p160 = scmp.eq.s32.totalorder %s17, 1
      %p161 = scmp.ne.s32.totalorder %s156, %s158
      %p162 = scmp.eq.s32.totalorder %s17, 0
      %p163 = por %p161, %p162
      %p164 = scmp.ne.s32.totalorder %s156, %s158
      %p165 = scmp.eq.s32.totalorder %s22, 1
      %p166 = por %p164, %p165
      %p167 = scmp.ne.s32.totalorder %s158, %s159
      %p168 = scmp.eq.s32.totalorder %s22, 0
      %p169 = por %p167, %p168
      %p170 = scmp.ne.s32.totalorder %s158, %s159
      %p171 = scmp.eq.s32.totalorder %s23, 1
      %p172 = por %p170, %p171
      %p174 = scmp.ne.s32.totalorder %s159, %s173
      %p175 = scmp.eq.s32.totalorder %s23, 0
      %p176 = por %p174, %p175
      %s177 = ssub.s32 %s17, %s24
      %p178 = scmp.eq.s32.totalorder %s177, 0
      %s180 = sadd.s32 %s179, 1
      %s181 = scalar_select %p178, %s179, %s180
      %p184 = pneg %p178
      %p185 = scmp.eq.s32.totalorder %s17, 1
      %p186 = por %p184, %p185
      %p187 = scmp.ne.s32.totalorder %s179, %s182
      %p188 = scmp.eq.s32.totalorder %s17, 0
      %p189 = por %p187, %p188
      %p190 = scmp.ne.s32.totalorder %s179, %s182
      %p191 = scmp.eq.s32.totalorder %s22, 1
      %p192 = por %p190, %p191
      %p193 = scmp.ne.s32.totalorder %s182, %s183
      %p194 = scmp.eq.s32.totalorder %s22, 0
      %p195 = por %p193, %p194
      %p196 = scmp.ne.s32.totalorder %s182, %s183
      %p197 = scmp.eq.s32.totalorder %s23, 1
      %p198 = por %p196, %p197
      %p200 = scmp.ne.s32.totalorder %s183, %s199
      %p201 = scmp.eq.s32.totalorder %s23, 0
      %p202 = por %p200, %p201
      %p203 = scmp.le.s32.totalorder 1, %s17
      %p204 = scmp.lt.s32.totalorder %s17, 3
      %p205 = pnand %p203, %p204
      %p206 = pneg %p205
      // Predicated region
      $region9: #{tpu_custom_call.1} parent=5 // pred_check
        _
      $region10: #{tpu_custom_call.1} parent=5 // pred_check_branch
        %208 = sbr.rel (%p205) target = $region12
      $region11: #{tpu_custom_call.1} parent=5 // pred_region
        %s209 = ssub.s32 %s17, 1
        // Predicated region
        $region13: #{tpu_custom_call.1} parent=11 // pred_check
          %p210 = pneg %p38
        $region14: #{tpu_custom_call.1} parent=11 // pred_check_branch
          %212 = sbr.rel (%p210) target = $region16
        $region15: #{tpu_custom_call.1} parent=11 // pred_region
          %s214 = ssub.s32 16, 16
          %215 = vsyncadd [#allocation4], %s214
          %s217 = sshll.u32 %s0, 4
          %s218 = int_to_ptr.vmem [resolvable:$true] %s217
          %220 = dma.vmem_to_smem %s218, 16, [#allocation2], [#allocation4]
        $region16: #{tpu_custom_call.1} parent=11 // pred_fallthru
          _
        // Predicated region
        $region17: #{tpu_custom_call.1} parent=11 // pred_check
          %p221 = pneg %p85
        $region18: #{tpu_custom_call.1} parent=11 // pred_check_branch
          %223 = sbr.rel (%p221) target = $region20
        $region19: #{tpu_custom_call.1} parent=11 // pred_region
          _
        $region20: #{tpu_custom_call.1} parent=11 // pred_fallthru
          _
        // Predicated region
        $region21: #{tpu_custom_call.1} parent=11 // pred_check
          %p224 = pneg %p106
        $region22: #{tpu_custom_call.1} parent=11 // pred_check_branch
          %226 = sbr.rel (%p224) target = $region24
        $region23: #{tpu_custom_call.1} parent=11 // pred_region
          _
        $region24: #{tpu_custom_call.1} parent=11 // pred_fallthru
          _
        // Predicated region
        $region25: #{tpu_custom_call.1} parent=11 // pred_check
          %p227 = pneg %p127
        $region26: #{tpu_custom_call.1} parent=11 // pred_check_branch
          %229 = sbr.rel (%p227) target = $region28
        $region27: #{tpu_custom_call.1} parent=11 // pred_region
          _
        $region28: #{tpu_custom_call.1} parent=11 // pred_fallthru
          _
        // Predicated region
        $region29: #{tpu_custom_call.1} parent=11 // pred_check
          %p230 = pneg %p148
        $region30: #{tpu_custom_call.1} parent=11 // pred_check_branch
          %232 = sbr.rel (%p230) target = $region32
        $region31: #{tpu_custom_call.1} parent=11 // pred_region
          _
        $region32: #{tpu_custom_call.1} parent=11 // pred_fallthru
          _
        // Predicated region
        $region33: #{tpu_custom_call.1} parent=11 // pred_check
          %p233 = pneg %p169
        $region34: #{tpu_custom_call.1} parent=11 // pred_check_branch
          %235 = sbr.rel (%p233) target = $region36
        $region35: #{tpu_custom_call.1} parent=11 // pred_region
          _
        $region36: #{tpu_custom_call.1} parent=11 // pred_fallthru
          _
      $region12: #{tpu_custom_call.1} parent=5 // pred_fallthru
        _
      %p236 = scmp.lt.s32.totalorder %s17, 2
      // Predicated region
      $region37: #{tpu_custom_call.1} parent=5 // pred_check
        %p237 = pneg %p236
      $region38: #{tpu_custom_call.1} parent=5 // pred_check_branch
        %239 = sbr.rel (%p237) target = $region40
      $region39: #{tpu_custom_call.1} parent=5 // pred_region
        // Predicated region
        $region41: #{tpu_custom_call.1} parent=39 // pred_check
          %p240 = pneg %p58
        $region42: #{tpu_custom_call.1} parent=39 // pred_check_branch
          %242 = sbr.rel (%p240) target = $region44
        $region43: #{tpu_custom_call.1} parent=39 // pred_region
          %p243 = scmp.lt.s32.totalorder %s17, 1
          %s244 = scalar_select %p243, %s17, 1
          %s245 = smul.addr %s244, 2
          %s246 = scalar_lea.vmem %s1, %s245
        $region44: #{tpu_custom_call.1} parent=39 // pred_fallthru
          _
      $region40: #{tpu_custom_call.1} parent=5 // pred_fallthru
        _
      %p247 = scmp.le.s32.totalorder 1, %s17
      %p248 = scmp.lt.s32.totalorder %s17, 3
      %p249 = pnand %p247, %p248
      %p250 = pneg %p249
      // Predicated region
      $region45: #{tpu_custom_call.1} parent=5 // pred_check
        _
      $region46: #{tpu_custom_call.1} parent=5 // pred_check_branch
        %252 = sbr.rel (%p249) target = $region48
      $region47: #{tpu_custom_call.1} parent=5 // pred_region
        %s253 = ssub.s32 %s17, 1
        // Predicated region
        $region49: #{tpu_custom_call.1} parent=47 // pred_check
          %p254 = pneg %p38
        $region50: #{tpu_custom_call.1} parent=47 // pred_check_branch
          %256 = sbr.rel (%p254) target = $region52
        $region51: #{tpu_custom_call.1} parent=47 // pred_region
          %257 = dma.done [#allocation4], 16
        $region52: #{tpu_custom_call.1} parent=47 // pred_fallthru
          _
        %258 = sfence
        %p259 = pneg %p38
        %p260 = pneg %p35
        %p261 = scmp.lt.s32.totalorder %s22, 1
        %s262 = scalar_select %p261, %s22, 1
        %s263 = smul.addr %s262, 2
        %s264 = scalar_lea.vmem %s1, %s263
        %p265 = pneg %p64
        %p266 = pneg %p61
        %p267 = pneg %p85
        %p268 = pneg %p82
        %p269 = pneg %p106
        %p270 = pneg %p103
        %p271 = pneg %p127
        %p272 = pneg %p124
        %p273 = pneg %p148
        %p274 = pneg %p145
        %p275 = pneg %p169
        %p276 = pneg %p166
        %p277 = pneg %p195
        %p278 = pneg %p192
        %s279 = sand.u32 %s182, 1
        %s280 = scalar_lea.sflag [#allocation3], %s279
        %s281 = sand.u32 %s182, 1
        %s282 = scalar_lea.vmem [#allocation5], %s281
        %p283 = scmp.lt.s32.totalorder %s22, 1
        %s284 = scalar_select %p283, %s22, 1
        %s285 = smul.addr %s284, 2
        %s286 = scalar_lea.vmem %s1, %s285
        %s288 = sld [smem:[#allocation2]]
        %s289 = sld [smem:[#allocation2 + $0x1]]
        %s290 = sld [smem:[#allocation2 + $0x2]]
        %v291 = vld [vmem:[%s286] sm:$0x3]
        %v292 = vld [vmem:[%s2] sm:$0xff]
        %v293 = vld [vmem:[%s2 + $0x8] sm:$0xff]
        %v294 = vld [vmem:[%s2 + $0x10] sm:$0xff]
        %v295 = vld [vmem:[%s2 + $0x18] sm:$0xff]
        %297 = vset.pattern.permute.xlu0 0
        %298 = vperm.xlu0 %297, %v292
        %v299 = vpop.permute.xlu0 %298
        %302 = vset.pattern.permute.xlu0 0
        %303 = vperm.xlu0 %302, %v293
        %v304 = vpop.permute.xlu0 %303
        %307 = vset.pattern.permute.xlu0 0
        %308 = vperm.xlu0 %307, %v294
        %v309 = vpop.permute.xlu0 %308
        %312 = vset.pattern.permute.xlu0 0
        %313 = vperm.xlu0 %312, %v295
        %v314 = vpop.permute.xlu0 %313
        %v316 = vlaneseq
        %v317 = vshrl.u32 %v316, 7
        %v318 = vsub.s32 0, %v317
        %v319 = vrot.slane %v291, %v318
        %v320 = vmul.f32 %v299, %v319
        %v321 = vmul.f32 %v304, %v319
        %v322 = vmul.f32 %v309, %v319
        %v323 = vmul.f32 %v314, %v319
        %324 = vset.pattern.permute.xlu0 1
        %325 = vperm.xlu0 %324, %v292
        %v326 = vpop.permute.xlu0 %325
        %328 = vset.pattern.permute.xlu0 1
        %329 = vperm.xlu0 %328, %v293
        %v330 = vpop.permute.xlu0 %329
        %332 = vset.pattern.permute.xlu0 1
        %333 = vperm.xlu0 %332, %v294
        %v334 = vpop.permute.xlu0 %333
        %336 = vset.pattern.permute.xlu0 1
        %337 = vperm.xlu0 %336, %v295
        %v338 = vpop.permute.xlu0 %337
        %v340 = vlaneseq
        %v341 = vshrl.u32 %v340, 7
        %v342 = vsub.s32 1, %v341
        %v343 = vrot.slane %v291, %v342
        %v344 = vmul.f32 %v326, %v343
        %v345 = vmul.f32 %v330, %v343
        %v346 = vmul.f32 %v334, %v343
        %v347 = vmul.f32 %v338, %v343
        %v348 = vadd.f32 %v320, %v344
        %v349 = vadd.f32 %v321, %v345
        %v350 = vadd.f32 %v322, %v346
        %v351 = vadd.f32 %v323, %v347
        %v352 = vld [vmem:[%s3] sm:$0xff]
        %v353 = vld [vmem:[%s3 + $0x8] sm:$0xff]
        %v354 = vld [vmem:[%s3 + $0x10] sm:$0xff]
        %v355 = vld [vmem:[%s3 + $0x18] sm:$0xff]
        %357 = vset.pattern.permute.xlu0 0
        %358 = vperm.xlu0 %357, %v352
        %v359 = vpop.permute.xlu0 %358
        %362 = vset.pattern.permute.xlu0 0
        %363 = vperm.xlu0 %362, %v353
        %v364 = vpop.permute.xlu0 %363
        %367 = vset.pattern.permute.xlu0 0
        %368 = vperm.xlu0 %367, %v354
        %v369 = vpop.permute.xlu0 %368
        %372 = vset.pattern.permute.xlu0 0
        %373 = vperm.xlu0 %372, %v355
        %v374 = vpop.permute.xlu0 %373
        %v376 = vadd.f32 %v348, %v359
        %v377 = vadd.f32 %v349, %v364
        %v378 = vadd.f32 %v350, %v369
        %v379 = vadd.f32 %v351, %v374
        %vm380 = vcmp.gt.f32.partialorder %v376, 0.0
        %vm381 = vcmp.gt.f32.partialorder %v377, 0.0
        %vm382 = vcmp.gt.f32.partialorder %v378, 0.0
        %vm383 = vcmp.gt.f32.partialorder %v379, 0.0
        %v384 = vstv %s288
        %v385 = vmul.f32 %v384, %v376
        %v386 = vmul.f32 %v384, %v377
        %v387 = vmul.f32 %v384, %v378
        %v388 = vmul.f32 %v384, %v379
        %v389 = vsel %vm380, %v376, %v385
        %v390 = vsel %vm381, %v377, %v386
        %v391 = vsel %vm382, %v378, %v387
        %v392 = vsel %vm383, %v379, %v388
        %v393 = vld [vmem:[%s4] sm:$0xf]
        %v394 = vld [vmem:[%s4 + $0x4] sm:$0xf]
        %v395 = vld [vmem:[%s4 + $0x8] sm:$0xf]
        %v396 = vld [vmem:[%s4 + $0xc] sm:$0xf]
        %v397 = vpack.c.bf16 %v390, %v389
        %v398 = vpack.c.bf16 %v392, %v391
        %v399 = vld [vmem:[%s5] sm:$0xff]
        %v400 = vld [vmem:[%s5 + $0x8] sm:$0xff]
        %v401 = vld [vmem:[%s5 + $0x10] sm:$0xff]
        %v402 = vld [vmem:[%s5 + $0x18] sm:$0xff]
        %404 = vset.pattern.permute.xlu0 0
        %405 = vperm.xlu0 %404, %v399
        %v406 = vpop.permute.xlu0 %405
        %409 = vset.pattern.permute.xlu0 0
        %410 = vperm.xlu0 %409, %v400
        %v411 = vpop.permute.xlu0 %410
        %414 = vset.pattern.permute.xlu0 0
        %415 = vperm.xlu0 %414, %v401
        %v416 = vpop.permute.xlu0 %415
        %419 = vset.pattern.permute.xlu0 0
        %420 = vperm.xlu0 %419, %v402
        %v421 = vpop.permute.xlu0 %420
        %v427 = vunpack.c.l.b16 %v393
        %v428 = vunpack.c.l.b16 %v394
        %v429 = vunpack.c.l.b16 %v395
        %v430 = vunpack.c.l.b16 %v396
        %v431 = vpack.c.b16 %v428, %v427
        %v432 = vpack.c.b16 %v430, %v429
        %vm433 = vcmask 261120
        %v435 = vsel %vm433, %v431, 0
        %v438 = vsel %vm433, %v432, 0
        %440 = vmatprep.subr.bf16.mxu0 0
        %441 = vmatpush1.bf16.msra.mxu0 %v397
        %442 = vmatprep.subr.bf16.mxu0 0
        %443 = vmatpush1.bf16.msra.mxu0 %v398
        %444 = vmatprep.subr.bf16.mxu0 0
        %445 = vmatpush1.bf16.msra.mxu0 0
        %446 = vmatprep.subr.bf16.mxu0 0
        %447 = vmatpush1.bf16.msra.mxu0 0
        %448 = vmatprep.subr.bf16.mxu0 0
        %449 = vmatpush1.bf16.msra.mxu0 0
        %450 = vmatprep.subr.bf16.mxu0 0
        %451 = vmatpush1.bf16.msra.mxu0 0
        %452 = vmatprep.subr.bf16.mxu0 0
        %453 = vmatpush1.bf16.msra.mxu0 0
        %454 = vmatprep.subr.bf16.mxu0 0
        %455 = vmatpush1.bf16.msra.mxu0 0
        %456 = vmatprep.subr.bf16.mxu0 0
        %457 = vmatpush1.bf16.msra.mxu0 0
        %458 = vmatprep.subr.bf16.mxu0 0
        %459 = vmatpush1.bf16.msra.mxu0 0
        %460 = vmatprep.subr.bf16.mxu0 0
        %461 = vmatpush1.bf16.msra.mxu0 0
        %462 = vmatprep.subr.bf16.mxu0 0
        %463 = vmatpush1.bf16.msra.mxu0 0
        %464 = vmatprep.subr.bf16.mxu0 0
        %465 = vmatpush1.bf16.msra.mxu0 0
        %466 = vmatprep.subr.bf16.mxu0 0
        %467 = vmatpush1.bf16.msra.mxu0 0
        %468 = vmatprep.subr.bf16.mxu0 0
        %469 = vmatpush1.bf16.msra.mxu0 0
        %470 = vmatprep.subr.bf16.mxu0 0
        %471 = vmatpush1.bf16.msra.mxu0 0
        %472 = vmatprep.mubr.bf16.mxu0 0
        %473 = vmatmul.mubr.bf16.gmra.mrb[0].mxu0 %v435
        %v474 = vpop.f32.mrb[0].mxu0
        %v475 = vadd.f32 %v406, %v474
        %v476 = vpop.f32.mrb[0].mxu0
        %v477 = vpop.f32.mrb[0].mxu0
        %v478 = vadd.f32 %v411, %v477
        %v479 = vpop.f32.mrb[0].mxu0
        %480 = vmatprep.mubr.bf16.mxu0 0
        %481 = vmatmul.mubr.bf16.gmra.mrb[0].mxu0 %v438
        %v482 = vpop.f32.mrb[0].mxu0
        %v483 = vadd.f32 %v416, %v482
        %v484 = vpop.f32.mrb[0].mxu0
        %v485 = vpop.f32.mrb[0].mxu0
        %v486 = vadd.f32 %v421, %v485
        %v487 = vpop.f32.mrb[0].mxu0
        %488 = vdwg.mxu0
        %vm489 = vcmp.gt.f32.partialorder %v475, 0.0
        %vm490 = vcmp.gt.f32.partialorder %v478, 0.0
        %vm491 = vcmp.gt.f32.partialorder %v483, 0.0
        %vm492 = vcmp.gt.f32.partialorder %v486, 0.0
        %v493 = vstv %s289
        %v494 = vmul.f32 %v493, %v475
        %v495 = vmul.f32 %v493, %v478
        %v496 = vmul.f32 %v493, %v483
        %v497 = vmul.f32 %v493, %v486
        %v498 = vsel %vm489, %v475, %v494
        %v499 = vsel %vm490, %v478, %v495
        %v500 = vsel %vm491, %v483, %v496
        %v501 = vsel %vm492, %v486, %v497
        %v502 = vld [vmem:[%s6] sm:$0xff]
        %v503 = vld [vmem:[%s6 + $0x8] sm:$0xff]
        %v504 = vld [vmem:[%s6 + $0x10] sm:$0xff]
        %v505 = vld [vmem:[%s6 + $0x18] sm:$0xff]
        %507 = vset.pattern.permute.xlu0 0
        %508 = vperm.xlu0 %507, %v502
        %v509 = vpop.permute.xlu0 %508
        %512 = vset.pattern.permute.xlu0 0
        %513 = vperm.xlu0 %512, %v503
        %v514 = vpop.permute.xlu0 %513
        %517 = vset.pattern.permute.xlu0 0
        %518 = vperm.xlu0 %517, %v504
        %v519 = vpop.permute.xlu0 %518
        %522 = vset.pattern.permute.xlu0 0
        %523 = vperm.xlu0 %522, %v505
        %v524 = vpop.permute.xlu0 %523
        %v526 = vmul.f32 %v509, %v498
        %v527 = vmul.f32 %v514, %v499
        %v528 = vmul.f32 %v519, %v500
        %v529 = vmul.f32 %v524, %v501
        %v530 = vadd.f32 %v526, %v527
        %v531 = vadd.f32 %v530, %v528
        %v532 = vadd.f32 %v531, %v529
        %v533 = vrot.slane %v532, 4
        %v534 = vadd.f32 %v532, %v533
        %v535 = vrot.slane %v534, 2
        %v536 = vadd.f32 %v534, %v535
        %v537 = vrot.slane %v536, 1
        %v538 = vadd.f32 %v536, %v537
        %v539 = vstv %s290
        %v540 = vadd.f32 %v538, %v539
        %v541 = vmin.f32 %v540, 20.0
        %v542 = vmul.f32 %v541, 1.442695
        %v543 = vpow.pop %v542
        %v544 = vadd.f32 %v543, 1.0
        %v545 = vlog2.pop %v544
        %v546 = vmul.f32 %v545, 0.6931472
        %v547 = vmul.f32 -0.5, %v543
        %v548 = vadd.f32 %v547, 1.0
        %v549 = vmul.f32 %v548, %v543
        %v550 = vand.u32 2147483647, %v543
        %vm551 = vcmp.lt.f32.partialorder %v550, 0.0004427343
        %v552 = vsel %vm551, %v549, %v546
        %vm553 = vcmp.gt.f32.partialorder %v540, 20.0
        %v554 = vsel %vm553, %v540, %v552
        %555 = vst [vmem:[%s282] sm:$0x1] %v554
        %s556 = sand.u32 %s182, 1
        %s557 = scalar_lea.sflag [#allocation3], %s556
        %s558 = sand.u32 %s182, 1
        %s559 = scalar_lea.vmem [#allocation5], %s558
        // Predicated region
        $region53: #{tpu_custom_call.1} parent=47 // pred_check
          %p560 = pneg %p192
        $region54: #{tpu_custom_call.1} parent=47 // pred_check_branch
          %562 = sbr.rel (%p560) target = $region56
        $region55: #{tpu_custom_call.1} parent=47 // pred_region
          %s564 = ssub.s32 16, 16
          %565 = vsyncadd %s557, %s564
          %s566 = smul.addr %s22, 16
          %s567 = scalar_lea.hbm %s7, %s566
          %s569 = sshll.u32 %s559, 4
          %s570 = int_to_ptr.vmem [resolvable:$true] %s569
          %572 = dma.vmem_to_hbm [thread:$0]  %s570, 16, %s567, %s557
        $region56: #{tpu_custom_call.1} parent=47 // pred_fallthru
          _
      $region48: #{tpu_custom_call.1} parent=5 // pred_fallthru
        _
      %p573 = scmp.le.s32.totalorder 2, %s17
      // Predicated region
      $region57: #{tpu_custom_call.1} parent=5 // pred_check
        %p574 = pneg %p573
      $region58: #{tpu_custom_call.1} parent=5 // pred_check_branch
        %576 = sbr.rel (%p574) target = $region60
      $region59: #{tpu_custom_call.1} parent=5 // pred_region
        %s577 = ssub.s32 %s17, 2
        // Predicated region
        $region61: #{tpu_custom_call.1} parent=59 // pred_check
          %p578 = pneg %p198
        $region62: #{tpu_custom_call.1} parent=59 // pred_check_branch
          %580 = sbr.rel (%p578) target = $region64
        $region63: #{tpu_custom_call.1} parent=59 // pred_region
          %s581 = sand.u32 %s183, 1
          %s582 = scalar_lea.sflag [#allocation3], %s581
          %s583 = sand.u32 %s183, 1
          %s584 = scalar_lea.vmem [#allocation5], %s583
          %585 = dma.done %s582, 16
        $region64: #{tpu_custom_call.1} parent=59 // pred_fallthru
          _
      $region60: #{tpu_custom_call.1} parent=5 // pred_fallthru
        _
    $region6: #{tpu_custom_call.1} parent=1 // loop_footer
      %s21 = sadd.s32 1, %s17
    $region7: #{tpu_custom_call.1} parent=1 // loop_footer_branch
      %16 = sbr.rel target = $region3
    $region8: #{tpu_custom_call.1} parent=1 // loop_exit
      _
    %586 = vsyncpa [#allocation3], 1
    %s587 = scalar_lea.sflag [#allocation3], 1
    %588 = vsyncpa %s587, 1
    %589 = vsyncpa [#allocation4], 1
    %s590 = scalar_lea.sflag [#allocation4], 1
    %591 = vsyncpa %s590, 1

</llo_original>
